<compile_context>
chip_gen: v7x
topology: tpu7x:2x2x1
jax: 0.10.0
libtpu: 0.0.40
codegen_flags: <defaults>
</compile_context>

<pallas_src>
import jax
import jax.numpy as jnp
from jax.experimental import pallas as pl
from jax.experimental.pallas import tpu as pltpu

EPS = 1e-5
LANE = 128


def _bn_relu_train(h, gamma, beta):
    """One-pass train-mode BatchNorm1d fused with ReLU (f32 math)."""
    s1 = jnp.mean(h, axis=0, keepdims=True)          # (1, F)
    s2 = jnp.mean(h * h, axis=0, keepdims=True)      # (1, F)
    var = s2 - s1 * s1                               # biased batch variance
    scale = gamma * jax.lax.rsqrt(var + EPS)         # (1, F); rsqrt -> EUP slot
    shift = beta - s1 * scale                        # (1, F)
    # single broadcasted mul+add per element, then ReLU
    return jnp.maximum(h * scale + shift, 0.0)


def net_kernel(x_ref,
               w1_ref, g1_ref, be1_ref,
               w2_ref, g2_ref, be2_ref,
               w3_ref, b3_ref,
               o_ref):
    x = x_ref[...]

    # layer1: Linear (bias omitted -- cancelled by train-mode BN) -> BN -> ReLU
    h1 = jnp.dot(x, w1_ref[...], preferred_element_type=jnp.float32)
    h1 = _bn_relu_train(h1, g1_ref[...], be1_ref[...])

    # layer2: Linear (bias omitted) -> BN -> ReLU
    h2 = jnp.dot(h1.astype(w2_ref.dtype), w2_ref[...],
                 preferred_element_type=jnp.float32)
    h2 = _bn_relu_train(h2, g2_ref[...], be2_ref[...])

    # layer3: Linear only, into a lane-dense (B, 128) padded slab
    o_ref[...] = (jnp.dot(h2.astype(w3_ref.dtype), w3_ref[...],
                          preferred_element_type=jnp.float32)
                  + b3_ref[...]).astype(o_ref.dtype)


def net_forward(x, params, *, matmul_dtype=jnp.float32):
    """x: (B, in_dim) f32. params: 10 arrays as produced by init_params.

    matmul_dtype: jnp.float32 for exact parity, jnp.bfloat16 for the
    v6e / v7x MXU-friendly path (f32 accumulation either way).
    """
    w1, b1, g1, be1, w2, b2, g2, be2, w3, b3 = params
    del b1, b2  # mathematically dead: cancelled by train-mode BN mean subtraction

    B, in_dim = x.shape
    h1_dim, h2_dim = w1.shape[1], w2.shape[1]
    out_dim = w3.shape[1]

    # Pad the final Linear to a lane-dense width so the output store is an
    # unmasked full-lane vst; slice back to out_dim in the wrapper.
    out_pad = max(LANE, ((out_dim + LANE - 1) // LANE) * LANE)
    w3p = jnp.zeros((w3.shape[0], out_pad), jnp.float32).at[:, :out_dim].set(w3)
    b3p = jnp.zeros((1, out_pad), jnp.float32).at[:, :out_dim].set(b3)

    # MXU operand dtype (bf16 on v6e/v7x halves weight DMA bytes and uses the
    # fast MXU path); BN params / math stay f32.
    xm = x.astype(matmul_dtype)
    w1m = w1.astype(matmul_dtype)
    w2m = w2.astype(matmul_dtype)
    w3m = w3p.astype(matmul_dtype)

    ins = (xm, w1m, g1, be1, w2m, g2, be2, w3m, b3p)

    flops = 2 * B * (in_dim * h1_dim + h1_dim * h2_dim + h2_dim * out_pad)
    bytes_accessed = (sum(int(a.size) * a.dtype.itemsize for a in ins)
                      + B * out_pad * 4)

    vmem = pl.BlockSpec(memory_space=pltpu.MemorySpace.VMEM)
    out_padded = pl.pallas_call(
        net_kernel,
        out_shape=jax.ShapeDtypeStruct((B, out_pad), jnp.float32),
        in_specs=[vmem] * len(ins),
        out_specs=vmem,
        cost_estimate=pl.CostEstimate(
            flops=flops,
            transcendentals=h1_dim + h2_dim,       # the two rsqrt rows
            bytes_accessed=bytes_accessed),
    )(*ins)

    # TODO(synk): for B >> 16 add a "parallel" batch grid (2 TCs on v7x) with a
    # two-pass BN (full-batch statistics), sized against v7x's 64 MiB VMEM.
    return out_padded[:, :out_dim]


def init_params(key, in_dim, n_hidden_1, n_hidden_2, out_dim):
    """Deterministic synthetic params, shapes matching the PyTorch module.

    Weights stored already transposed to (in_features, out_features) so the
    kernel does x @ W. 1-D params kept as (1, F) to stay lane-major on TPU.
    """
    ks = jax.random.split(key, 6)

    def lin(kw, fan_in, fan_out):
        bound = 1.0 / jnp.sqrt(fan_in)
        w = jax.random.uniform(kw, (fan_in, fan_out), jnp.float32, -bound, bound)
        b = jax.random.uniform(jax.random.fold_in(kw, 1), (1, fan_out),
                               jnp.float32, -bound, bound)
        return w, b

    w1, b1 = lin(ks[0], in_dim, n_hidden_1)
    w2, b2 = lin(ks[1], n_hidden_1, n_hidden_2)
    w3, b3 = lin(ks[2], n_hidden_2, out_dim)

    g1 = 1.0 + 0.1 * jax.random.normal(ks[3], (1, n_hidden_1), jnp.float32)
    be1 = 0.1 * jax.random.normal(jax.random.fold_in(ks[3], 1),
                                  (1, n_hidden_1), jnp.float32)
    g2 = 1.0 + 0.1 * jax.random.normal(ks[4], (1, n_hidden_2), jnp.float32)
    be2 = 0.1 * jax.random.normal(jax.random.fold_in(ks[4], 1),
                                  (1, n_hidden_2), jnp.float32)

    return (w1, b1, g1, be1, w2, b2, g2, be2, w3, b3)


def reference_forward(x, params):
    """Pure-JAX f32 reference of the PyTorch forward (train-mode BN)."""
    w1, b1, g1, be1, w2, b2, g2, be2, w3, b3 = params

    def bn(h, gamma, beta):
        mean = jnp.mean(h, axis=0, keepdims=True)
        var = jnp.mean((h - mean) ** 2, axis=0, keepdims=True)
        return (h - mean) * jax.lax.rsqrt(var + EPS) * gamma + beta

    h = jnp.maximum(bn(x @ w1 + b1, g1, be1), 0.0)
    h = jnp.maximum(bn(h @ w2 + b2, g2, be2), 0.0)
    return h @ w3 + b3


if __name__ == "__main__":
    # Small shapes consistent with the MNIST MLP (in_dim, h1, h2, out_dim).
    B, in_dim, n_hidden_1, n_hidden_2, out_dim = 16, 64, 128, 64, 10

    key = jax.random.PRNGKey(0)
    kx, kp = jax.random.split(key)
    x = jax.random.normal(kx, (B, in_dim), jnp.float32)
    params = init_params(kp, in_dim, n_hidden_1, n_hidden_2, out_dim)

    ref = reference_forward(x, params)

    # f32 MXU path: exact-parity check against the PyTorch-semantics reference.
    out_f32 = jax.block_until_ready(net_forward(x, params))
    assert out_f32.shape == (B, out_dim)
    assert jnp.allclose(out_f32, ref, atol=1e-4, rtol=1e-4)

    # bf16 MXU-operand path (v6e / v7x recommendation): looser tolerance.
    out_bf16 = jax.block_until_ready(
        net_forward(x, params, matmul_dtype=jnp.bfloat16))
    assert out_bf16.shape == (B, out_dim)
    assert jnp.allclose(out_bf16, ref, atol=1.5e-1, rtol=1e-1)

    print("KERNEL_OK")
</pallas_src>

<mosaic_0001>
module attributes {stable_mosaic.version = 11 : i64} {
  func.func @net_kernel(%arg0: memref<16x64xf32, #tpu.memory_space<vmem>>, %arg1: memref<64x128xf32, #tpu.memory_space<vmem>>, %arg2: memref<1x128xf32, #tpu.memory_space<vmem>>, %arg3: memref<1x128xf32, #tpu.memory_space<vmem>>, %arg4: memref<128x64xf32, #tpu.memory_space<vmem>>, %arg5: memref<1x64xf32, #tpu.memory_space<vmem>>, %arg6: memref<1x64xf32, #tpu.memory_space<vmem>>, %arg7: memref<64x128xf32, #tpu.memory_space<vmem>>, %arg8: memref<1x128xf32, #tpu.memory_space<vmem>>, %arg9: memref<16x128xf32, #tpu.memory_space<vmem>>) attributes {dimension_semantics = [], scalar_prefetch = 0 : i64, scratch_operands = 0 : i64, tpu.core_type = #tpu.core_type<tc>} {
    %c0 = arith.constant 0 : index
    %c0_0 = arith.constant 0 : index
    %0 = vector.load %arg0[%c0, %c0_0] : memref<16x64xf32, #tpu.memory_space<vmem>>, vector<16x64xf32>
    %c0_1 = arith.constant 0 : index
    %c0_2 = arith.constant 0 : index
    %1 = vector.load %arg1[%c0_1, %c0_2] : memref<64x128xf32, #tpu.memory_space<vmem>>, vector<64x128xf32>
    %cst = arith.constant dense<0.000000e+00> : vector<16x128xf32>
    %2 = tpu.matmul %0, %1, %cst {dimension_numbers = #tpu.dot_dimension_numbers<[1], [0], [0], [1], [0, 0, 1, 1], [], []>} : vector<16x64xf32>, vector<64x128xf32>, vector<16x128xf32> -> vector<16x128xf32>
    %c0_3 = arith.constant 0 : index
    %c0_4 = arith.constant 0 : index
    %3 = vector.load %arg2[%c0_3, %c0_4] : memref<1x128xf32, #tpu.memory_space<vmem>>, vector<1x128xf32>
    %c0_5 = arith.constant 0 : index
    %c0_6 = arith.constant 0 : index
    %4 = vector.load %arg3[%c0_5, %c0_6] : memref<1x128xf32, #tpu.memory_space<vmem>>, vector<1x128xf32>
    %cst_7 = arith.constant dense<0.000000e+00> : vector<128xf32>
    %5 = vector.multi_reduction <add>, %2, %cst_7 [0] : vector<16x128xf32> to vector<128xf32>
    %6 = vector.shape_cast %5 : vector<128xf32> to vector<1x128xf32>
    %cst_8 = arith.constant 1.600000e+01 : f32
    %7 = vector.broadcast %cst_8 : f32 to vector<1x128xf32>
    %8 = arith.divf %6, %7 : vector<1x128xf32>
    %9 = arith.mulf %2, %2 : vector<16x128xf32>
    %cst_9 = arith.constant dense<0.000000e+00> : vector<128xf32>
    %10 = vector.multi_reduction <add>, %9, %cst_9 [0] : vector<16x128xf32> to vector<128xf32>
    %11 = vector.shape_cast %10 : vector<128xf32> to vector<1x128xf32>
    %cst_10 = arith.constant 1.600000e+01 : f32
    %12 = vector.broadcast %cst_10 : f32 to vector<1x128xf32>
    %13 = arith.divf %11, %12 : vector<1x128xf32>
    %14 = arith.mulf %8, %8 : vector<1x128xf32>
    %15 = arith.subf %13, %14 : vector<1x128xf32>
    %cst_11 = arith.constant 9.99999974E-6 : f32
    %16 = vector.broadcast %cst_11 : f32 to vector<1x128xf32>
    %17 = arith.addf %15, %16 : vector<1x128xf32>
    %18 = math.rsqrt %17 : vector<1x128xf32>
    %19 = arith.mulf %3, %18 : vector<1x128xf32>
    %20 = arith.mulf %8, %19 : vector<1x128xf32>
    %21 = arith.subf %4, %20 : vector<1x128xf32>
    %22 = vector.broadcast %19 : vector<1x128xf32> to vector<16x128xf32>
    %23 = arith.mulf %2, %22 : vector<16x128xf32>
    %24 = vector.broadcast %21 : vector<1x128xf32> to vector<16x128xf32>
    %25 = arith.addf %23, %24 : vector<16x128xf32>
    %cst_12 = arith.constant 0.000000e+00 : f32
    %26 = vector.broadcast %cst_12 : f32 to vector<16x128xf32>
    %27 = arith.maximumf %25, %26 : vector<16x128xf32>
    %c0_13 = arith.constant 0 : index
    %c0_14 = arith.constant 0 : index
    %28 = vector.load %arg4[%c0_13, %c0_14] : memref<128x64xf32, #tpu.memory_space<vmem>>, vector<128x64xf32>
    %cst_15 = arith.constant dense<0.000000e+00> : vector<16x64xf32>
    %29 = tpu.matmul %27, %28, %cst_15 {dimension_numbers = #tpu.dot_dimension_numbers<[1], [0], [0], [1], [0, 0, 1, 1], [], []>} : vector<16x128xf32>, vector<128x64xf32>, vector<16x64xf32> -> vector<16x64xf32>
    %c0_16 = arith.constant 0 : index
    %c0_17 = arith.constant 0 : index
    %30 = vector.load %arg5[%c0_16, %c0_17] : memref<1x64xf32, #tpu.memory_space<vmem>>, vector<1x64xf32>
    %c0_18 = arith.constant 0 : index
    %c0_19 = arith.constant 0 : index
    %31 = vector.load %arg6[%c0_18, %c0_19] : memref<1x64xf32, #tpu.memory_space<vmem>>, vector<1x64xf32>
    %cst_20 = arith.constant dense<0.000000e+00> : vector<64xf32>
    %32 = vector.multi_reduction <add>, %29, %cst_20 [0] : vector<16x64xf32> to vector<64xf32>
    %33 = vector.shape_cast %32 : vector<64xf32> to vector<1x64xf32>
    %cst_21 = arith.constant 1.600000e+01 : f32
    %34 = vector.broadcast %cst_21 : f32 to vector<1x64xf32>
    %35 = arith.divf %33, %34 : vector<1x64xf32>
    %36 = arith.mulf %29, %29 : vector<16x64xf32>
    %cst_22 = arith.constant dense<0.000000e+00> : vector<64xf32>
    %37 = vector.multi_reduction <add>, %36, %cst_22 [0] : vector<16x64xf32> to vector<64xf32>
    %38 = vector.shape_cast %37 : vector<64xf32> to vector<1x64xf32>
    %cst_23 = arith.constant 1.600000e+01 : f32
    %39 = vector.broadcast %cst_23 : f32 to vector<1x64xf32>
    %40 = arith.divf %38, %39 : vector<1x64xf32>
    %41 = arith.mulf %35, %35 : vector<1x64xf32>
    %42 = arith.subf %40, %41 : vector<1x64xf32>
    %cst_24 = arith.constant 9.99999974E-6 : f32
    %43 = vector.broadcast %cst_24 : f32 to vector<1x64xf32>
    %44 = arith.addf %42, %43 : vector<1x64xf32>
    %45 = math.rsqrt %44 : vector<1x64xf32>
    %46 = arith.mulf %30, %45 : vector<1x64xf32>
    %47 = arith.mulf %35, %46 : vector<1x64xf32>
    %48 = arith.subf %31, %47 : vector<1x64xf32>
    %49 = vector.broadcast %46 : vector<1x64xf32> to vector<16x64xf32>
    %50 = arith.mulf %29, %49 : vector<16x64xf32>
    %51 = vector.broadcast %48 : vector<1x64xf32> to vector<16x64xf32>
    %52 = arith.addf %50, %51 : vector<16x64xf32>
    %cst_25 = arith.constant 0.000000e+00 : f32
    %53 = vector.broadcast %cst_25 : f32 to vector<16x64xf32>
    %54 = arith.maximumf %52, %53 : vector<16x64xf32>
    %c0_26 = arith.constant 0 : index
    %c0_27 = arith.constant 0 : index
    %55 = vector.load %arg7[%c0_26, %c0_27] : memref<64x128xf32, #tpu.memory_space<vmem>>, vector<64x128xf32>
    %cst_28 = arith.constant dense<0.000000e+00> : vector<16x128xf32>
    %56 = tpu.matmul %54, %55, %cst_28 {dimension_numbers = #tpu.dot_dimension_numbers<[1], [0], [0], [1], [0, 0, 1, 1], [], []>} : vector<16x64xf32>, vector<64x128xf32>, vector<16x128xf32> -> vector<16x128xf32>
    %c0_29 = arith.constant 0 : index
    %c0_30 = arith.constant 0 : index
    %57 = vector.load %arg8[%c0_29, %c0_30] : memref<1x128xf32, #tpu.memory_space<vmem>>, vector<1x128xf32>
    %58 = vector.broadcast %57 : vector<1x128xf32> to vector<16x128xf32>
    %59 = arith.addf %56, %58 : vector<16x128xf32>
    %c0_31 = arith.constant 0 : index
    %c0_32 = arith.constant 0 : index
    %60 = vector.load %arg9[%c0_31, %c0_32] : memref<16x128xf32, #tpu.memory_space<vmem>>, vector<16x128xf32>
    tpu.vector_store %arg9[%c0_31, %c0_32], %59 {strides = array<i32>} : memref<16x128xf32, #tpu.memory_space<vmem>>, vector<16x128xf32>,
    return
  }
}

</mosaic_0001>

<llo_original>
// kernel: tpu_custom_call.1
$region0: #{tpu_custom_call.1}
  #allocation0 [shape = 'u32[]', space=smem, size = 0x4, offset = 0x4, fixed_abs, tag = 'smem constant byte address 0x4 - core index']
  #allocation1 [shape = 'u32[144,128]{1,0:T(1,128)}', space=vmem, size = 0x12000, scoped, tag = 'internal scratch']
  %s0 = inlined_call_operand.vmem [shape: f32[16,64], index: 0, kind: input, shape index: {}]
  %s1 = inlined_call_operand.vmem [shape: f32[64,128], index: 1, kind: input, shape index: {}]
  %s2 = inlined_call_operand.vmem [shape: f32[1,128], index: 2, kind: input, shape index: {}]
  %s3 = inlined_call_operand.vmem [shape: f32[1,128], index: 3, kind: input, shape index: {}]
  %s4 = inlined_call_operand.vmem [shape: f32[128,64], index: 4, kind: input, shape index: {}]
  %s5 = inlined_call_operand.vmem [shape: f32[1,64], index: 5, kind: input, shape index: {}]
  %s6 = inlined_call_operand.vmem [shape: f32[1,64], index: 6, kind: input, shape index: {}]
  %s7 = inlined_call_operand.vmem [shape: f32[64,128], index: 7, kind: input, shape index: {}]
  %s8 = inlined_call_operand.vmem [shape: f32[1,128], index: 8, kind: input, shape index: {}]
  %s9 = inlined_call_operand.hbm [shape: f32[16,128], index: 9, kind: output, shape index: {}]
  %s10 = sld [smem:[#allocation0]]
  $region46: #{tpu_custom_call.1} parent=0
    _
  %s12 = ssub.s32 1, %s10
  %s13 = scalar_select 0, %s12, %s10
  $region1: #{tpu_custom_call.1} parent=0
    #allocation2 [shape = 'u8[8192]{0}', space=vmem, size = 0x2000, scoped, tag = 'output window, operand 0, single buffered']
    #allocation3 [shape = 's32[1]{0}', space=sflag, size = 0x4, scoped, tag = 'scoped memory for tpu_custom_call.1']
    %14 = vsyncpa [#allocation3], 0
    // Predicated region
    $region2: #{tpu_custom_call.1} parent=1 // pred_check
      _
    $region3: #{tpu_custom_call.1} parent=1 // pred_check_branch
      %16 = sbr.rel (0) target = $region5
    $region4: #{tpu_custom_call.1} parent=1 // pred_region
      _
    $region5: #{tpu_custom_call.1} parent=1 // pred_fallthru
      _
    // Predicated region
    $region6: #{tpu_custom_call.1} parent=1 // pred_check
      _
    $region7: #{tpu_custom_call.1} parent=1 // pred_check_branch
      %18 = sbr.rel (0) target = $region9
    $region8: #{tpu_custom_call.1} parent=1 // pred_region
      _
    $region9: #{tpu_custom_call.1} parent=1 // pred_fallthru
      _
    // Predicated region
    $region10: #{tpu_custom_call.1} parent=1 // pred_check
      _
    $region11: #{tpu_custom_call.1} parent=1 // pred_check_branch
      %20 = sbr.rel (0) target = $region13
    $region12: #{tpu_custom_call.1} parent=1 // pred_region
      _
    $region13: #{tpu_custom_call.1} parent=1 // pred_fallthru
      _
    // Predicated region
    $region14: #{tpu_custom_call.1} parent=1 // pred_check
      _
    $region15: #{tpu_custom_call.1} parent=1 // pred_check_branch
      %22 = sbr.rel (0) target = $region17
    $region16: #{tpu_custom_call.1} parent=1 // pred_region
      _
    $region17: #{tpu_custom_call.1} parent=1 // pred_fallthru
      _
    // Predicated region
    $region18: #{tpu_custom_call.1} parent=1 // pred_check
      _
    $region19: #{tpu_custom_call.1} parent=1 // pred_check_branch
      %24 = sbr.rel (0) target = $region21
    $region20: #{tpu_custom_call.1} parent=1 // pred_region
      _
    $region21: #{tpu_custom_call.1} parent=1 // pred_fallthru
      _
    // Predicated region
    $region22: #{tpu_custom_call.1} parent=1 // pred_check
      _
    $region23: #{tpu_custom_call.1} parent=1 // pred_check_branch
      %26 = sbr.rel (0) target = $region25
    $region24: #{tpu_custom_call.1} parent=1 // pred_region
      _
    $region25: #{tpu_custom_call.1} parent=1 // pred_fallthru
      _
    // Predicated region
    $region26: #{tpu_custom_call.1} parent=1 // pred_check
      _
    $region27: #{tpu_custom_call.1} parent=1 // pred_check_branch
      %28 = sbr.rel (0) target = $region29
    $region28: #{tpu_custom_call.1} parent=1 // pred_region
      _
    $region29: #{tpu_custom_call.1} parent=1 // pred_fallthru
      _
    // Predicated region
    $region30: #{tpu_custom_call.1} parent=1 // pred_check
      _
    $region31: #{tpu_custom_call.1} parent=1 // pred_check_branch
      %30 = sbr.rel (0) target = $region33
    $region32: #{tpu_custom_call.1} parent=1 // pred_region
      _
    $region33: #{tpu_custom_call.1} parent=1 // pred_fallthru
      _
    // Predicated region
    $region34: #{tpu_custom_call.1} parent=1 // pred_check
      _
    $region35: #{tpu_custom_call.1} parent=1 // pred_check_branch
      %32 = sbr.rel (0) target = $region37
    $region36: #{tpu_custom_call.1} parent=1 // pred_region
      _
    $region37: #{tpu_custom_call.1} parent=1 // pred_fallthru
      _
    %v33 = vld [vmem:[%s0] sm:$0xff]
    %v34 = vld [vmem:[%s0 + $0x8] sm:$0xff]
    %v35 = vld [vmem:[%s1] sm:$0xff]
    %v36 = vld [vmem:[%s1 + $0x8] sm:$0xff]
    %v37 = vld [vmem:[%s1 + $0x10] sm:$0xff]
    %v38 = vld [vmem:[%s1 + $0x18] sm:$0xff]
    %v39 = vld [vmem:[%s1 + $0x20] sm:$0xff]
    %v40 = vld [vmem:[%s1 + $0x28] sm:$0xff]
    %v41 = vld [vmem:[%s1 + $0x30] sm:$0xff]
    %v42 = vld [vmem:[%s1 + $0x38] sm:$0xff]
    %vm43 = vcmask 523264
    %v45 = vsel %vm43, %v33, 0
    %v48 = vsel %vm43, %v34, 0
    %50 = vmatprep.subr.mxu0 0.0
    %51 = vmatpush1.msra.mxu0 %v35
    %52 = vmatprep.subr.mxu0 0.0
    %53 = vmatpush1.msra.mxu0 %v36
    %54 = vmatprep.subr.mxu0 0.0
    %55 = vmatpush1.msra.mxu0 %v37
    %56 = vmatprep.subr.mxu0 0.0
    %57 = vmatpush1.msra.mxu0 %v38
    %58 = vmatprep.subr.mxu0 0.0
    %59 = vmatpush1.msra.mxu0 %v39
    %60 = vmatprep.subr.mxu0 0.0
    %61 = vmatpush1.msra.mxu0 %v40
    %62 = vmatprep.subr.mxu0 0.0
    %63 = vmatpush1.msra.mxu0 %v41
    %64 = vmatprep.subr.mxu0 0.0
    %65 = vmatpush1.msra.mxu0 %v42
    %66 = vmatprep.subr.mxu0 0.0
    %67 = vmatpush1.msra.mxu0 0.0
    %68 = vmatprep.subr.mxu0 0.0
    %69 = vmatpush1.msra.mxu0 0.0
    %70 = vmatprep.subr.mxu0 0.0
    %71 = vmatpush1.msra.mxu0 0.0
    %72 = vmatprep.subr.mxu0 0.0
    %73 = vmatpush1.msra.mxu0 0.0
    %74 = vmatprep.subr.mxu0 0.0
    %75 = vmatpush1.msra.mxu0 0.0
    %76 = vmatprep.subr.mxu0 0.0
    %77 = vmatpush1.msra.mxu0 0.0
    %78 = vmatprep.subr.mxu0 0.0
    %79 = vmatpush1.msra.mxu0 0.0
    %80 = vmatprep.subr.mxu0 0.0
    %81 = vmatpush1.msra.mxu0 0.0
    %82 = vmatprep.subr.mxu0 0.0
    %83 = vmatpush1.msra.mxu0 0.0
    %84 = vmatprep.subr.mxu0 0.0
    %85 = vmatpush1.msra.mxu0 0.0
    %86 = vmatprep.subr.mxu0 0.0
    %87 = vmatpush1.msra.mxu0 0.0
    %88 = vmatprep.subr.mxu0 0.0
    %89 = vmatpush1.msra.mxu0 0.0
    %90 = vmatprep.subr.mxu0 0.0
    %91 = vmatpush1.msra.mxu0 0.0
    %92 = vmatprep.subr.mxu0 0.0
    %93 = vmatpush1.msra.mxu0 0.0
    %94 = vmatprep.subr.mxu0 0.0
    %95 = vmatpush1.msra.mxu0 0.0
    %96 = vmatprep.subr.mxu0 0.0
    %97 = vmatpush1.msra.mxu0 0.0
    %98 = vmatprep.subr.mxu0 0.0
    %99 = vmatpush1.msra.mxu0 0.0
    %100 = vmatprep.subr.mxu0 0.0
    %101 = vmatpush1.msra.mxu0 0.0
    %102 = vmatprep.subr.mxu0 0.0
    %103 = vmatpush1.msra.mxu0 0.0
    %104 = vmatprep.subr.mxu0 0.0
    %105 = vmatpush1.msra.mxu0 0.0
    %106 = vmatprep.subr.mxu0 0.0
    %107 = vmatpush1.msra.mxu0 0.0
    %108 = vmatprep.subr.mxu0 0.0
    %109 = vmatpush1.msra.mxu0 0.0
    %110 = vmatprep.subr.mxu0 0.0
    %111 = vmatpush1.msra.mxu0 0.0
    %112 = vmatprep.subr.mxu0 0.0
    %113 = vmatpush1.msra.mxu0 0.0
    %114 = vmatprep.mubr.f32.mxu0 0.0
    %115 = vmatmul.mubr.f32.gmra.mrb[0].mxu0 %v45
    %v116 = vpop.f32.mrb[0].mxu0
    %v117 = vadd.f32 0.0, %v116
    %v118 = vpop.f32.mrb[0].mxu0
    %119 = vmatprep.mubr.f32.mxu0 0.0
    %120 = vmatmul.mubr.f32.gmra.mrb[0].mxu0 %v48
    %v121 = vpop.f32.mrb[0].mxu0
    %v122 = vadd.f32 0.0, %v121
    %v123 = vpop.f32.mrb[0].mxu0
    %124 = vdwg.mxu0
    %v125 = vld [vmem:[%s2] sm:$0x1]
    %v126 = vld [vmem:[%s3] sm:$0x1]
    %v127 = vadd.f32 %v117, %v122
    %v128 = vrot.slane %v127, 4
    %v129 = vadd.f32 %v127, %v128
    %v130 = vrot.slane %v129, 2
    %v131 = vadd.f32 %v129, %v130
    %v132 = vrot.slane %v131, 1
    %v133 = vadd.f32 %v131, %v132
    %v134 = vrcp.pop 16.0
    %v135 = vmul.f32 %v133, %v134
    %v136 = vmul.f32 %v117, %v117
    %v137 = vmul.f32 %v122, %v122
    %v138 = vadd.f32 %v136, %v137
    %v139 = vrot.slane %v138, 4
    %v140 = vadd.f32 %v138, %v139
    %v141 = vrot.slane %v140, 2
    %v142 = vadd.f32 %v140, %v141
    %v143 = vrot.slane %v142, 1
    %v144 = vadd.f32 %v142, %v143
    %v145 = vmul.f32 %v144, %v134
    %v146 = vmul.f32 %v135, %v135
    %v147 = vsub.f32 %v145, %v146
    %v148 = vadd.f32 %v147, 1e-05
    %v149 = vrsqrt.pop %v148
    %v150 = vmul.f32 %v125, %v149
    %v151 = vmul.f32 %v135, %v150
    %v152 = vsub.f32 %v126, %v151
    %v154 = vlaneseq
    %v155 = vshrl.u32 %v154, 7
    %v156 = vsub.s32 0, %v155
    %v157 = vrot.slane %v150, %v156
    %v159 = vmul.f32 %v117, %v157
    %v160 = vmul.f32 %v122, %v157
    %v162 = vlaneseq
    %v163 = vshrl.u32 %v162, 7
    %v164 = vsub.s32 0, %v163
    %v165 = vrot.slane %v152, %v164
    %v167 = vadd.f32 %v159, %v165
    %v168 = vadd.f32 %v160, %v165
    %v169 = vmax.f32 %v167, 0.0
    %v170 = vmax.f32 %v168, 0.0
    %v171 = vld [vmem:[%s4] sm:$0xff]
    %v172 = vld [vmem:[%s4 + $0x8] sm:$0xff]
    %v173 = vld [vmem:[%s4 + $0x10] sm:$0xff]
    %v174 = vld [vmem:[%s4 + $0x18] sm:$0xff]
    %v175 = vld [vmem:[%s4 + $0x20] sm:$0xff]
    %v176 = vld [vmem:[%s4 + $0x28] sm:$0xff]
    %v177 = vld [vmem:[%s4 + $0x30] sm:$0xff]
    %v178 = vld [vmem:[%s4 + $0x38] sm:$0xff]
    %v179 = vld [vmem:[%s4 + $0x40] sm:$0xff]
    %v180 = vld [vmem:[%s4 + $0x48] sm:$0xff]
    %v181 = vld [vmem:[%s4 + $0x50] sm:$0xff]
    %v182 = vld [vmem:[%s4 + $0x58] sm:$0xff]
    %v183 = vld [vmem:[%s4 + $0x60] sm:$0xff]
    %v184 = vld [vmem:[%s4 + $0x68] sm:$0xff]
    %v185 = vld [vmem:[%s4 + $0x70] sm:$0xff]
    %v186 = vld [vmem:[%s4 + $0x78] sm:$0xff]
    %187 = vmatprep.subr.mxu0 0.0
    %188 = vmatpush1.msra.mxu0 %v171
    %189 = vmatprep.subr.mxu0 0.0
    %190 = vmatpush1.msra.mxu0 %v172
    %191 = vmatprep.subr.mxu0 0.0
    %192 = vmatpush1.msra.mxu0 %v173
    %193 = vmatprep.subr.mxu0 0.0
    %194 = vmatpush1.msra.mxu0 %v174
    %195 = vmatprep.subr.mxu0 0.0
    %196 = vmatpush1.msra.mxu0 %v175
    %197 = vmatprep.subr.mxu0 0.0
    %198 = vmatpush1.msra.mxu0 %v176
    %199 = vmatprep.subr.mxu0 0.0
    %200 = vmatpush1.msra.mxu0 %v177
    %201 = vmatprep.subr.mxu0 0.0
    %202 = vmatpush1.msra.mxu0 %v178
    %203 = vmatprep.subr.mxu0 0.0
    %204 = vmatpush1.msra.mxu0 %v179
    %205 = vmatprep.subr.mxu0 0.0
    %206 = vmatpush1.msra.mxu0 %v180
    %207 = vmatprep.subr.mxu0 0.0
    %208 = vmatpush1.msra.mxu0 %v181
    %209 = vmatprep.subr.mxu0 0.0
    %210 = vmatpush1.msra.mxu0 %v182
    %211 = vmatprep.subr.mxu0 0.0
    %212 = vmatpush1.msra.mxu0 %v183
    %213 = vmatprep.subr.mxu0 0.0
    %214 = vmatpush1.msra.mxu0 %v184
    %215 = vmatprep.subr.mxu0 0.0
    %216 = vmatpush1.msra.mxu0 %v185
    %217 = vmatprep.subr.mxu0 0.0
    %218 = vmatpush1.msra.mxu0 %v186
    %219 = vmatprep.subr.mxu0 0.0
    %220 = vmatpush1.msra.mxu0 0.0
    %221 = vmatprep.subr.mxu0 0.0
    %222 = vmatpush1.msra.mxu0 0.0
    %223 = vmatprep.subr.mxu0 0.0
    %224 = vmatpush1.msra.mxu0 0.0
    %225 = vmatprep.subr.mxu0 0.0
    %226 = vmatpush1.msra.mxu0 0.0
    %227 = vmatprep.subr.mxu0 0.0
    %228 = vmatpush1.msra.mxu0 0.0
    %229 = vmatprep.subr.mxu0 0.0
    %230 = vmatpush1.msra.mxu0 0.0
    %231 = vmatprep.subr.mxu0 0.0
    %232 = vmatpush1.msra.mxu0 0.0
    %233 = vmatprep.subr.mxu0 0.0
    %234 = vmatpush1.msra.mxu0 0.0
    %235 = vmatprep.subr.mxu0 0.0
    %236 = vmatpush1.msra.mxu0 0.0
    %237 = vmatprep.subr.mxu0 0.0
    %238 = vmatpush1.msra.mxu0 0.0
    %239 = vmatprep.subr.mxu0 0.0
    %240 = vmatpush1.msra.mxu0 0.0
    %241 = vmatprep.subr.mxu0 0.0
    %242 = vmatpush1.msra.mxu0 0.0
    %243 = vmatprep.subr.mxu0 0.0
    %244 = vmatpush1.msra.mxu0 0.0
    %245 = vmatprep.subr.mxu0 0.0
    %246 = vmatpush1.msra.mxu0 0.0
    %247 = vmatprep.subr.mxu0 0.0
    %248 = vmatpush1.msra.mxu0 0.0
    %249 = vmatprep.subr.mxu0 0.0
    %250 = vmatpush1.msra.mxu0 0.0
    %251 = vmatprep.mubr.f32.mxu0 0.0
    %252 = vmatmul.mubr.f32.gmra.mrb[0].mxu0 %v169
    %v253 = vpop.f32.mrb[0].mxu0
    %v254 = vadd.f32 0.0, %v253
    %v255 = vpop.f32.mrb[0].mxu0
    %256 = vmatprep.mubr.f32.mxu0 0.0
    %257 = vmatmul.mubr.f32.gmra.mrb[0].mxu0 %v170
    %v258 = vpop.f32.mrb[0].mxu0
    %v259 = vadd.f32 0.0, %v258
    %v260 = vpop.f32.mrb[0].mxu0
    %261 = vdwg.mxu0
    %v262 = vld [vmem:[%s5] sm:$0x1]
    %v263 = vld [vmem:[%s6] sm:$0x1]
    %v264 = vsel %vm43, %v254, 0.0
    %v265 = vsel %vm43, %v259, 0.0
    %v266 = vadd.f32 %v264, %v265
    %v267 = vrot.slane %v266, 4
    %v268 = vadd.f32 %v266, %v267
    %v269 = vrot.slane %v268, 2
    %v270 = vadd.f32 %v268, %v269
    %v271 = vrot.slane %v270, 1
    %v272 = vadd.f32 %v270, %v271
    %v273 = vmul.f32 %v272, %v134
    %v274 = vmul.f32 %v254, %v254
    %v275 = vmul.f32 %v259, %v259
    %v276 = vsel %vm43, %v274, 0.0
    %v277 = vsel %vm43, %v275, 0.0
    %v278 = vadd.f32 %v276, %v277
    %v279 = vrot.slane %v278, 4
    %v280 = vadd.f32 %v278, %v279
    %v281 = vrot.slane %v280, 2
    %v282 = vadd.f32 %v280, %v281
    %v283 = vrot.slane %v282, 1
    %v284 = vadd.f32 %v282, %v283
    %v285 = vmul.f32 %v284, %v134
    %v286 = vmul.f32 %v273, %v273
    %v287 = vsub.f32 %v285, %v286
    %v288 = vadd.f32 %v287, 1e-05
    %v289 = vrsqrt.pop %v288
    %v290 = vmul.f32 %v262, %v289
    %v291 = vmul.f32 %v273, %v290
    %v292 = vsub.f32 %v263, %v291
    %v294 = vlaneseq
    %v295 = vshrl.u32 %v294, 7
    %v296 = vsub.s32 0, %v295
    %v297 = vrot.slane %v290, %v296
    %v299 = vmul.f32 %v254, %v297
    %v300 = vmul.f32 %v259, %v297
    %v302 = vlaneseq
    %v303 = vshrl.u32 %v302, 7
    %v304 = vsub.s32 0, %v303
    %v305 = vrot.slane %v292, %v304
    %v307 = vadd.f32 %v299, %v305
    %v308 = vadd.f32 %v300, %v305
    %v309 = vmax.f32 %v307, 0.0
    %v310 = vmax.f32 %v308, 0.0
    %v311 = vld [vmem:[%s7] sm:$0xff]
    %v312 = vld [vmem:[%s7 + $0x8] sm:$0xff]
    %v313 = vld [vmem:[%s7 + $0x10] sm:$0xff]
    %v314 = vld [vmem:[%s7 + $0x18] sm:$0xff]
    %v315 = vld [vmem:[%s7 + $0x20] sm:$0xff]
    %v316 = vld [vmem:[%s7 + $0x28] sm:$0xff]
    %v317 = vld [vmem:[%s7 + $0x30] sm:$0xff]
    %v318 = vld [vmem:[%s7 + $0x38] sm:$0xff]
    %v319 = vld [vmem:[%s8] sm:$0x1]
    %v321 = vlaneseq
    %v322 = vshrl.u32 %v321, 7
    %v323 = vsub.s32 0, %v322
    %v324 = vrot.slane %v319, %v323
    %v327 = vsel %vm43, %v309, 0
    %v330 = vsel %vm43, %v310, 0
    %332 = vmatprep.subr.mxu0 0.0
    %333 = vmatpush1.msra.mxu0 %v311
    %334 = vmatprep.subr.mxu0 0.0
    %335 = vmatpush1.msra.mxu0 %v312
    %336 = vmatprep.subr.mxu0 0.0
    %337 = vmatpush1.msra.mxu0 %v313
    %338 = vmatprep.subr.mxu0 0.0
    %339 = vmatpush1.msra.mxu0 %v314
    %340 = vmatprep.subr.mxu0 0.0
    %341 = vmatpush1.msra.mxu0 %v315
    %342 = vmatprep.subr.mxu0 0.0
    %343 = vmatpush1.msra.mxu0 %v316
    %344 = vmatprep.subr.mxu0 0.0
    %345 = vmatpush1.msra.mxu0 %v317
    %346 = vmatprep.subr.mxu0 0.0
    %347 = vmatpush1.msra.mxu0 %v318
    %348 = vmatprep.subr.mxu0 0.0
    %349 = vmatpush1.msra.mxu0 0.0
    %350 = vmatprep.subr.mxu0 0.0
    %351 = vmatpush1.msra.mxu0 0.0
    %352 = vmatprep.subr.mxu0 0.0
    %353 = vmatpush1.msra.mxu0 0.0
    %354 = vmatprep.subr.mxu0 0.0
    %355 = vmatpush1.msra.mxu0 0.0
    %356 = vmatprep.subr.mxu0 0.0
    %357 = vmatpush1.msra.mxu0 0.0
    %358 = vmatprep.subr.mxu0 0.0
    %359 = vmatpush1.msra.mxu0 0.0
    %360 = vmatprep.subr.mxu0 0.0
    %361 = vmatpush1.msra.mxu0 0.0
    %362 = vmatprep.subr.mxu0 0.0
    %363 = vmatpush1.msra.mxu0 0.0
    %364 = vmatprep.subr.mxu0 0.0
    %365 = vmatpush1.msra.mxu0 0.0
    %366 = vmatprep.subr.mxu0 0.0
    %367 = vmatpush1.msra.mxu0 0.0
    %368 = vmatprep.subr.mxu0 0.0
    %369 = vmatpush1.msra.mxu0 0.0
    %370 = vmatprep.subr.mxu0 0.0
    %371 = vmatpush1.msra.mxu0 0.0
    %372 = vmatprep.subr.mxu0 0.0
    %373 = vmatpush1.msra.mxu0 0.0
    %374 = vmatprep.subr.mxu0 0.0
    %375 = vmatpush1.msra.mxu0 0.0
    %376 = vmatprep.subr.mxu0 0.0
    %377 = vmatpush1.msra.mxu0 0.0
    %378 = vmatprep.subr.mxu0 0.0
    %379 = vmatpush1.msra.mxu0 0.0
    %380 = vmatprep.subr.mxu0 0.0
    %381 = vmatpush1.msra.mxu0 0.0
    %382 = vmatprep.subr.mxu0 0.0
    %383 = vmatpush1.msra.mxu0 0.0
    %384 = vmatprep.subr.mxu0 0.0
    %385 = vmatpush1.msra.mxu0 0.0
    %386 = vmatprep.subr.mxu0 0.0
    %387 = vmatpush1.msra.mxu0 0.0
    %388 = vmatprep.subr.mxu0 0.0
    %389 = vmatpush1.msra.mxu0 0.0
    %390 = vmatprep.subr.mxu0 0.0
    %391 = vmatpush1.msra.mxu0 0.0
    %392 = vmatprep.subr.mxu0 0.0
    %393 = vmatpush1.msra.mxu0 0.0
    %394 = vmatprep.subr.mxu0 0.0
    %395 = vmatpush1.msra.mxu0 0.0
    %396 = vmatprep.mubr.f32.mxu0 0.0
    %397 = vmatmul.mubr.f32.gmra.mrb[0].mxu0 %v327
    %v398 = vpop.f32.mrb[0].mxu0
    %v399 = vadd.f32 %v324, %v398
    %v400 = vpop.f32.mrb[0].mxu0
    %401 = vmatprep.mubr.f32.mxu0 0.0
    %402 = vmatmul.mubr.f32.gmra.mrb[0].mxu0 %v330
    %v403 = vpop.f32.mrb[0].mxu0
    %v404 = vadd.f32 %v324, %v403
    %v405 = vpop.f32.mrb[0].mxu0
    %406 = vdwg.mxu0
    %407 = vst [vmem:[#allocation2] sm:$0xff] %v399
    %408 = vst [vmem:[#allocation2 + $0x8] sm:$0xff] %v404
    // Predicated region
    $region38: #{tpu_custom_call.1} parent=1 // pred_check
      _
    $region39: #{tpu_custom_call.1} parent=1 // pred_check_branch
      %410 = sbr.rel (0) target = $region41
    $region40: #{tpu_custom_call.1} parent=1 // pred_region
      %s412 = ssub.s32 256, 256
      %413 = vsyncadd [#allocation3], %s412
      %s414 = sshll.u32 [#allocation2], 4
      %s415 = int_to_ptr.vmem [resolvable:$true] %s414
      %420 = dma.vmem_to_hbm [thread:$0]  %s415, 256, %s9, [#allocation3], 128, 128, 8
    $region41: #{tpu_custom_call.1} parent=1 // pred_fallthru
      _
    // Predicated region
    $region42: #{tpu_custom_call.1} parent=1 // pred_check
      _
    $region43: #{tpu_custom_call.1} parent=1 // pred_check_branch
      %422 = sbr.rel (0) target = $region45
    $region44: #{tpu_custom_call.1} parent=1 // pred_region
      %423 = dma.done [#allocation3], 256
    $region45: #{tpu_custom_call.1} parent=1 // pred_fallthru
      _
    %424 = vsyncpa [#allocation3], 1

</llo_original>
